<compile_context>
chip_gen: v7x
topology: tpu7x:2x2x1
jax: 0.10.0
libtpu: 0.0.40
codegen_flags: <defaults>
</compile_context>

<pallas_src>
import functools

import jax
import jax.numpy as jnp
from jax.experimental import pallas as pl
from jax.experimental.pallas import tpu as pltpu


NEG_SLOPE = 0.2       # PyG GATConv default LeakyReLU negative slope
MASK_VAL = -1e30      # additive mask value for non-edges


def _leaky_relu(x):
    return jnp.where(x > 0, x, NEG_SLOPE * x)


def _masked_softmax_rows(e, mask_bias):
    """Row-wise softmax of (e + mask_bias), f32; reciprocal goes to the EUP."""
    e = e + mask_bias
    e = e - jnp.max(e, axis=-1, keepdims=True)
    p = jnp.exp(e)
    return p * pl.reciprocal(jnp.sum(p, axis=-1, keepdims=True), approx=True)


def _gat2_kernel(x_ref, w0_ref, w1_ref, bias_ref, mask_ref, out_ref, *,
                 heads, f1, out_channels):
    hf = heads * f1
    bias = bias_ref[...]                                  # [1, hf + C] f32
    b0 = bias[:, :hf]
    b1 = bias[:, hf:hf + out_channels]
    mask = mask_ref[...].astype(jnp.float32)              # [N, N] (add in f32)

    # ---------------- layer 1: GATConv(Fin -> F1, H heads) + ReLU ----------------
    # Single wide bf16 MXU matmul: features AND per-head src/dst attention logits.
    h_aug = jnp.dot(x_ref[...], w0_ref[...],
                    preferred_element_type=jnp.float32)   # [N, hf + 2H] f32
    h = h_aug[:, :hf]                                     # [N, hf]
    a_src = h_aug[:, hf:hf + heads]                       # [N, H]
    a_dst = h_aug[:, hf + heads:hf + 2 * heads]           # [N, H]
    h_bf = h.astype(jnp.bfloat16)

    # Static per-head loop == batched einsum 'hij,hjf->hif' (Mosaic loops the
    # batch dim anyway); logits built with a VPU broadcast add, not the MXU.
    agg = []
    for hd in range(heads):
        e = _leaky_relu(a_dst[:, hd:hd + 1] + a_src[:, hd:hd + 1].T)   # [N, N]
        attn = _masked_softmax_rows(e, mask)                            # f32
        agg.append(jnp.dot(attn.astype(jnp.bfloat16),
                           h_bf[:, hd * f1:(hd + 1) * f1],
                           preferred_element_type=jnp.float32))         # [N, F1]
    o1 = jnp.maximum(jnp.concatenate(agg, axis=-1) + b0, 0.0)           # [N, hf]

    # ---------------- layer 2: GATConv(hf -> C, 1 head) + softmax ----------------
    h2_aug = jnp.dot(o1.astype(jnp.bfloat16), w1_ref[...],
                     preferred_element_type=jnp.float32)  # [N, C + 2] f32
    h2 = h2_aug[:, :out_channels]                         # [N, C]
    e2 = _leaky_relu(h2_aug[:, out_channels + 1:out_channels + 2]   # dst col
                     + h2_aug[:, out_channels:out_channels + 1].T)  # src row
    attn2 = _masked_softmax_rows(e2, mask)                # [N, N]
    o2 = jnp.dot(attn2.astype(jnp.bfloat16), h2.astype(jnp.bfloat16),
                 preferred_element_type=jnp.float32) + b1

    # Final class softmax — EXACT divide so rows sum to 1 for downstream use.
    o2 = o2 - jnp.max(o2, axis=-1, keepdims=True)
    p2 = jnp.exp(o2)
    out_ref[...] = (p2 / jnp.sum(p2, axis=-1, keepdims=True)).astype(out_ref.dtype)


def gat_forward(x, adj, params, *, hidden_channels, num_heads):
    """Eval-mode GAT forward: both GATConv layers fused into one Pallas kernel."""
    w0, asrc0, adst0, b0, w1, asrc1, adst1, b1 = params
    n = x.shape[0]
    heads = num_heads
    f1 = hidden_channels
    hf = heads * f1
    out_channels = w1.shape[1]

    # One additive edge mask for both layers, stored bf16 (half the DMA bytes).
    mask_bias = jnp.where(adj > 0, 0.0, MASK_VAL).astype(jnp.bfloat16)   # [N, N]

    # Fold attention projections into the feature weights (computed in f32,
    # cast once):  w0_aug = [ w0 | w0 @ a_src | w0 @ a_dst ]  -> [Fin, hf + 2H]
    w0_3 = w0.reshape(w0.shape[0], heads, f1)
    src_cols = jnp.einsum("khf,hf->kh", w0_3, asrc0)                     # [Fin, H]
    dst_cols = jnp.einsum("khf,hf->kh", w0_3, adst0)                     # [Fin, H]
    w0_aug = jnp.concatenate([w0, src_cols, dst_cols], axis=1).astype(jnp.bfloat16)

    # Layer 2 (single head): w1_aug = [ w1 | w1 @ a_src | w1 @ a_dst ] -> [hf, C+2]
    w1_aug = jnp.concatenate([w1, w1 @ asrc1.T, w1 @ adst1.T],
                             axis=1).astype(jnp.bfloat16)

    # Pack both biases into one small f32 input.
    bias_packed = jnp.concatenate([b0, b1]).reshape(1, hf + out_channels)
    bias_packed = bias_packed.astype(jnp.float32)

    kernel = functools.partial(_gat2_kernel, heads=heads, f1=f1,
                               out_channels=out_channels)
    vmem = pl.BlockSpec(memory_space=pltpu.MemorySpace.VMEM)
    return pl.pallas_call(
        kernel,
        out_shape=jax.ShapeDtypeStruct((n, out_channels), jnp.float32),
        in_specs=[vmem] * 5,
        out_specs=vmem,
    )(x.astype(jnp.bfloat16), w0_aug, w1_aug, bias_packed, mask_bias)


def _reference(x, adj, params, *, hidden_channels, num_heads):
    """Plain-JAX f32 reference mirroring PyG GATConv (dense formulation)."""
    def conv(x, w, a_src, a_dst, bias, heads, f):
        h = x @ w                                       # [N, H*F]
        n = x.shape[0]
        h3 = h.reshape(n, heads, f)
        asrc = jnp.einsum("nhf,hf->nh", h3, a_src)      # [N, H]
        adst = jnp.einsum("nhf,hf->nh", h3, a_dst)      # [N, H]
        e = adst[:, None, :] + asrc[None, :, :]         # [dst, src, H]
        e = jnp.where(e > 0, e, NEG_SLOPE * e)
        e = jnp.where(adj[:, :, None] > 0, e, MASK_VAL)
        e = e - jnp.max(e, axis=1, keepdims=True)
        p = jnp.exp(e)
        attn = p / jnp.sum(p, axis=1, keepdims=True)
        o = jnp.einsum("ijh,jhf->ihf", attn, h3).reshape(n, heads * f)
        return o + bias[None, :]

    w0, asrc0, adst0, b0, w1, asrc1, adst1, b1 = params
    h = jax.nn.relu(conv(x, w0, asrc0, adst0, b0, num_heads, hidden_channels))
    out_channels = w1.shape[1]
    o = conv(h, w1, asrc1, adst1, b1, 1, out_channels)
    return jax.nn.softmax(o, axis=-1)


if __name__ == "__main__":
    # Small, module-consistent shapes.
    N, E = 16, 40
    in_channels, hidden_channels, out_channels = 16, 8, 8
    num_heads, num_layers = 4, 2

    key = jax.random.PRNGKey(0)
    k_x, k_src, k_dst, k_w0, k_a0s, k_a0d, k_w1, k_a1s, k_a1d = jax.random.split(key, 9)

    x = jax.random.normal(k_x, (N, in_channels), jnp.float32)
    src = jax.random.randint(k_src, (E,), 0, N)
    dst = jax.random.randint(k_dst, (E,), 0, N)
    edge_index = jnp.stack([src, dst])                                  # [2, E]

    # Dense adjacency mask adj[dst, src] with self-loops (add_self_loops=True).
    adj = jnp.zeros((N, N), jnp.float32).at[dst, src].set(1.0)
    adj = adj.at[jnp.arange(N), jnp.arange(N)].set(1.0)

    # Deterministic parameter init (glorot-ish scale), biases zero like PyG.
    def glorot(k, shape):
        fan = sum(shape)
        return jax.random.normal(k, shape, jnp.float32) * (2.0 / fan) ** 0.5

    params = (
        glorot(k_w0, (in_channels, num_heads * hidden_channels)),   # layer 0 weight
        glorot(k_a0s, (num_heads, hidden_channels)),                # att_src
        glorot(k_a0d, (num_heads, hidden_channels)),                # att_dst
        jnp.zeros((num_heads * hidden_channels,), jnp.float32),     # bias
        glorot(k_w1, (num_heads * hidden_channels, out_channels)),  # layer 1 weight
        glorot(k_a1s, (1, out_channels)),
        glorot(k_a1d, (1, out_channels)),
        jnp.zeros((out_channels,), jnp.float32),
    )

    out = gat_forward(x, adj, params,
                      hidden_channels=hidden_channels, num_heads=num_heads)
    out = jax.block_until_ready(out)

    ref = _reference(x, adj, params,
                     hidden_channels=hidden_channels, num_heads=num_heads)
    assert out.shape == (N, out_channels)
    # Tolerance accounts for bf16 MXU operands and the approximate (EUP)
    # reciprocal used in the two ATTENTION softmaxes (final softmax is exact).
    assert jnp.allclose(out, ref, atol=2e-2, rtol=2e-2), "mismatch vs reference"
    # Final class softmax uses an exact divide, so rows sum to 1.
    assert jnp.allclose(jnp.sum(out, axis=-1), 1.0, atol=1e-3)

    print("KERNEL_OK")
</pallas_src>

<mosaic_0001>
module attributes {stable_mosaic.version = 11 : i64} {
  func.func @_gat2_kernel(%arg0: memref<16x16xbf16, #tpu.memory_space<vmem>>, %arg1: memref<16x40xbf16, #tpu.memory_space<vmem>>, %arg2: memref<32x10xbf16, #tpu.memory_space<vmem>>, %arg3: memref<1x40xf32, #tpu.memory_space<vmem>>, %arg4: memref<16x16xbf16, #tpu.memory_space<vmem>>, %arg5: memref<16x8xf32, #tpu.memory_space<vmem>>) attributes {dimension_semantics = [], scalar_prefetch = 0 : i64, scratch_operands = 0 : i64, tpu.core_type = #tpu.core_type<tc>} {
    %c0 = arith.constant 0 : index
    %c0_0 = arith.constant 0 : index
    %0 = vector.load %arg3[%c0, %c0_0] : memref<1x40xf32, #tpu.memory_space<vmem>>, vector<1x40xf32>
    %1 = vector.extract_strided_slice %0 {offsets = [0, 0], sizes = [1, 32], strides = [1, 1]} : vector<1x40xf32> to vector<1x32xf32>
    %2 = vector.extract_strided_slice %0 {offsets = [0, 32], sizes = [1, 8], strides = [1, 1]} : vector<1x40xf32> to vector<1x8xf32>
    %c0_1 = arith.constant 0 : index
    %c0_2 = arith.constant 0 : index
    %3 = vector.load %arg4[%c0_1, %c0_2] : memref<16x16xbf16, #tpu.memory_space<vmem>>, vector<16x16xbf16>
    %4 = arith.extf %3 : vector<16x16xbf16> to vector<16x16xf32>
    %c0_3 = arith.constant 0 : index
    %c0_4 = arith.constant 0 : index
    %5 = vector.load %arg0[%c0_3, %c0_4] : memref<16x16xbf16, #tpu.memory_space<vmem>>, vector<16x16xbf16>
    %c0_5 = arith.constant 0 : index
    %c0_6 = arith.constant 0 : index
    %6 = vector.load %arg1[%c0_5, %c0_6] : memref<16x40xbf16, #tpu.memory_space<vmem>>, vector<16x40xbf16>
    %cst = arith.constant dense<0.000000e+00> : vector<16x40xf32>
    %7 = tpu.matmul %5, %6, %cst {dimension_numbers = #tpu.dot_dimension_numbers<[1], [0], [0], [1], [0, 0, 1, 1], [], []>} : vector<16x16xbf16>, vector<16x40xbf16>, vector<16x40xf32> -> vector<16x40xf32>
    %8 = vector.extract_strided_slice %7 {offsets = [0, 0], sizes = [16, 32], strides = [1, 1]} : vector<16x40xf32> to vector<16x32xf32>
    %9 = vector.extract_strided_slice %7 {offsets = [0, 32], sizes = [16, 4], strides = [1, 1]} : vector<16x40xf32> to vector<16x4xf32>
    %10 = vector.extract_strided_slice %7 {offsets = [0, 36], sizes = [16, 4], strides = [1, 1]} : vector<16x40xf32> to vector<16x4xf32>
    %11 = arith.truncf %8 : vector<16x32xf32> to vector<16x32xbf16>
    %12 = vector.extract_strided_slice %10 {offsets = [0, 0], sizes = [16, 1], strides = [1, 1]} : vector<16x4xf32> to vector<16x1xf32>
    %13 = vector.extract_strided_slice %9 {offsets = [0, 0], sizes = [16, 1], strides = [1, 1]} : vector<16x4xf32> to vector<16x1xf32>
    %14 = tpu.transpose %13, [1, 0] : vector<16x1xf32> -> vector<1x16xf32>
    %15 = vector.broadcast %12 : vector<16x1xf32> to vector<16x16xf32>
    %16 = vector.broadcast %14 : vector<1x16xf32> to vector<16x16xf32>
    %17 = arith.addf %15, %16 : vector<16x16xf32>
    %cst_7 = arith.constant 0.000000e+00 : f32
    %18 = vector.broadcast %cst_7 : f32 to vector<16x16xf32>
    %19 = arith.cmpf ogt, %17, %18 : vector<16x16xf32>
    %cst_8 = arith.constant 2.000000e-01 : f32
    %20 = vector.broadcast %cst_8 : f32 to vector<16x16xf32>
    %21 = arith.mulf %20, %17 : vector<16x16xf32>
    %22 = arith.select %19, %17, %21 : vector<16x16xi1>, vector<16x16xf32>
    %23 = arith.addf %22, %4 : vector<16x16xf32>
    %cst_9 = arith.constant dense<0xFF800000> : vector<16xf32>
    %24 = vector.multi_reduction <maximumf>, %23, %cst_9 [1] : vector<16x16xf32> to vector<16xf32>
    %25 = vector.shape_cast %24 : vector<16xf32> to vector<16x1xf32>
    %26 = vector.broadcast %25 : vector<16x1xf32> to vector<16x16xf32>
    %27 = arith.subf %23, %26 : vector<16x16xf32>
    %28 = math.exp %27 : vector<16x16xf32>
    %cst_10 = arith.constant dense<0.000000e+00> : vector<16xf32>
    %29 = vector.multi_reduction <add>, %28, %cst_10 [1] : vector<16x16xf32> to vector<16xf32>
    %30 = vector.shape_cast %29 : vector<16xf32> to vector<16x1xf32>
    %31 = tpu.reciprocal %30 {approx = true} : vector<16x1xf32> -> vector<16x1xf32>
    %32 = vector.broadcast %31 : vector<16x1xf32> to vector<16x16xf32>
    %33 = arith.mulf %28, %32 : vector<16x16xf32>
    %34 = arith.truncf %33 : vector<16x16xf32> to vector<16x16xbf16>
    %35 = vector.extract_strided_slice %11 {offsets = [0, 0], sizes = [16, 8], strides = [1, 1]} : vector<16x32xbf16> to vector<16x8xbf16>
    %cst_11 = arith.constant dense<0.000000e+00> : vector<16x8xf32>
    %36 = tpu.matmul %34, %35, %cst_11 {dimension_numbers = #tpu.dot_dimension_numbers<[1], [0], [0], [1], [0, 0, 1, 1], [], []>} : vector<16x16xbf16>, vector<16x8xbf16>, vector<16x8xf32> -> vector<16x8xf32>
    %37 = vector.extract_strided_slice %10 {offsets = [0, 1], sizes = [16, 1], strides = [1, 1]} : vector<16x4xf32> to vector<16x1xf32>
    %38 = vector.extract_strided_slice %9 {offsets = [0, 1], sizes = [16, 1], strides = [1, 1]} : vector<16x4xf32> to vector<16x1xf32>
    %39 = tpu.transpose %38, [1, 0] : vector<16x1xf32> -> vector<1x16xf32>
    %40 = vector.broadcast %37 : vector<16x1xf32> to vector<16x16xf32>
    %41 = vector.broadcast %39 : vector<1x16xf32> to vector<16x16xf32>
    %42 = arith.addf %40, %41 : vector<16x16xf32>
    %cst_12 = arith.constant 0.000000e+00 : f32
    %43 = vector.broadcast %cst_12 : f32 to vector<16x16xf32>
    %44 = arith.cmpf ogt, %42, %43 : vector<16x16xf32>
    %cst_13 = arith.constant 2.000000e-01 : f32
    %45 = vector.broadcast %cst_13 : f32 to vector<16x16xf32>
    %46 = arith.mulf %45, %42 : vector<16x16xf32>
    %47 = arith.select %44, %42, %46 : vector<16x16xi1>, vector<16x16xf32>
    %48 = arith.addf %47, %4 : vector<16x16xf32>
    %cst_14 = arith.constant dense<0xFF800000> : vector<16xf32>
    %49 = vector.multi_reduction <maximumf>, %48, %cst_14 [1] : vector<16x16xf32> to vector<16xf32>
    %50 = vector.shape_cast %49 : vector<16xf32> to vector<16x1xf32>
    %51 = vector.broadcast %50 : vector<16x1xf32> to vector<16x16xf32>
    %52 = arith.subf %48, %51 : vector<16x16xf32>
    %53 = math.exp %52 : vector<16x16xf32>
    %cst_15 = arith.constant dense<0.000000e+00> : vector<16xf32>
    %54 = vector.multi_reduction <add>, %53, %cst_15 [1] : vector<16x16xf32> to vector<16xf32>
    %55 = vector.shape_cast %54 : vector<16xf32> to vector<16x1xf32>
    %56 = tpu.reciprocal %55 {approx = true} : vector<16x1xf32> -> vector<16x1xf32>
    %57 = vector.broadcast %56 : vector<16x1xf32> to vector<16x16xf32>
    %58 = arith.mulf %53, %57 : vector<16x16xf32>
    %59 = arith.truncf %58 : vector<16x16xf32> to vector<16x16xbf16>
    %60 = vector.extract_strided_slice %11 {offsets = [0, 8], sizes = [16, 8], strides = [1, 1]} : vector<16x32xbf16> to vector<16x8xbf16>
    %cst_16 = arith.constant dense<0.000000e+00> : vector<16x8xf32>
    %61 = tpu.matmul %59, %60, %cst_16 {dimension_numbers = #tpu.dot_dimension_numbers<[1], [0], [0], [1], [0, 0, 1, 1], [], []>} : vector<16x16xbf16>, vector<16x8xbf16>, vector<16x8xf32> -> vector<16x8xf32>
    %62 = vector.extract_strided_slice %10 {offsets = [0, 2], sizes = [16, 1], strides = [1, 1]} : vector<16x4xf32> to vector<16x1xf32>
    %63 = vector.extract_strided_slice %9 {offsets = [0, 2], sizes = [16, 1], strides = [1, 1]} : vector<16x4xf32> to vector<16x1xf32>
    %64 = tpu.transpose %63, [1, 0] : vector<16x1xf32> -> vector<1x16xf32>
    %65 = vector.broadcast %62 : vector<16x1xf32> to vector<16x16xf32>
    %66 = vector.broadcast %64 : vector<1x16xf32> to vector<16x16xf32>
    %67 = arith.addf %65, %66 : vector<16x16xf32>
    %cst_17 = arith.constant 0.000000e+00 : f32
    %68 = vector.broadcast %cst_17 : f32 to vector<16x16xf32>
    %69 = arith.cmpf ogt, %67, %68 : vector<16x16xf32>
    %cst_18 = arith.constant 2.000000e-01 : f32
    %70 = vector.broadcast %cst_18 : f32 to vector<16x16xf32>
    %71 = arith.mulf %70, %67 : vector<16x16xf32>
    %72 = arith.select %69, %67, %71 : vector<16x16xi1>, vector<16x16xf32>
    %73 = arith.addf %72, %4 : vector<16x16xf32>
    %cst_19 = arith.constant dense<0xFF800000> : vector<16xf32>
    %74 = vector.multi_reduction <maximumf>, %73, %cst_19 [1] : vector<16x16xf32> to vector<16xf32>
    %75 = vector.shape_cast %74 : vector<16xf32> to vector<16x1xf32>
    %76 = vector.broadcast %75 : vector<16x1xf32> to vector<16x16xf32>
    %77 = arith.subf %73, %76 : vector<16x16xf32>
    %78 = math.exp %77 : vector<16x16xf32>
    %cst_20 = arith.constant dense<0.000000e+00> : vector<16xf32>
    %79 = vector.multi_reduction <add>, %78, %cst_20 [1] : vector<16x16xf32> to vector<16xf32>
    %80 = vector.shape_cast %79 : vector<16xf32> to vector<16x1xf32>
    %81 = tpu.reciprocal %80 {approx = true} : vector<16x1xf32> -> vector<16x1xf32>
    %82 = vector.broadcast %81 : vector<16x1xf32> to vector<16x16xf32>
    %83 = arith.mulf %78, %82 : vector<16x16xf32>
    %84 = arith.truncf %83 : vector<16x16xf32> to vector<16x16xbf16>
    %85 = vector.extract_strided_slice %11 {offsets = [0, 16], sizes = [16, 8], strides = [1, 1]} : vector<16x32xbf16> to vector<16x8xbf16>
    %cst_21 = arith.constant dense<0.000000e+00> : vector<16x8xf32>
    %86 = tpu.matmul %84, %85, %cst_21 {dimension_numbers = #tpu.dot_dimension_numbers<[1], [0], [0], [1], [0, 0, 1, 1], [], []>} : vector<16x16xbf16>, vector<16x8xbf16>, vector<16x8xf32> -> vector<16x8xf32>
    %87 = vector.extract_strided_slice %10 {offsets = [0, 3], sizes = [16, 1], strides = [1, 1]} : vector<16x4xf32> to vector<16x1xf32>
    %88 = vector.extract_strided_slice %9 {offsets = [0, 3], sizes = [16, 1], strides = [1, 1]} : vector<16x4xf32> to vector<16x1xf32>
    %89 = tpu.transpose %88, [1, 0] : vector<16x1xf32> -> vector<1x16xf32>
    %90 = vector.broadcast %87 : vector<16x1xf32> to vector<16x16xf32>
    %91 = vector.broadcast %89 : vector<1x16xf32> to vector<16x16xf32>
    %92 = arith.addf %90, %91 : vector<16x16xf32>
    %cst_22 = arith.constant 0.000000e+00 : f32
    %93 = vector.broadcast %cst_22 : f32 to vector<16x16xf32>
    %94 = arith.cmpf ogt, %92, %93 : vector<16x16xf32>
    %cst_23 = arith.constant 2.000000e-01 : f32
    %95 = vector.broadcast %cst_23 : f32 to vector<16x16xf32>
    %96 = arith.mulf %95, %92 : vector<16x16xf32>
    %97 = arith.select %94, %92, %96 : vector<16x16xi1>, vector<16x16xf32>
    %98 = arith.addf %97, %4 : vector<16x16xf32>
    %cst_24 = arith.constant dense<0xFF800000> : vector<16xf32>
    %99 = vector.multi_reduction <maximumf>, %98, %cst_24 [1] : vector<16x16xf32> to vector<16xf32>
    %100 = vector.shape_cast %99 : vector<16xf32> to vector<16x1xf32>
    %101 = vector.broadcast %100 : vector<16x1xf32> to vector<16x16xf32>
    %102 = arith.subf %98, %101 : vector<16x16xf32>
    %103 = math.exp %102 : vector<16x16xf32>
    %cst_25 = arith.constant dense<0.000000e+00> : vector<16xf32>
    %104 = vector.multi_reduction <add>, %103, %cst_25 [1] : vector<16x16xf32> to vector<16xf32>
    %105 = vector.shape_cast %104 : vector<16xf32> to vector<16x1xf32>
    %106 = tpu.reciprocal %105 {approx = true} : vector<16x1xf32> -> vector<16x1xf32>
    %107 = vector.broadcast %106 : vector<16x1xf32> to vector<16x16xf32>
    %108 = arith.mulf %103, %107 : vector<16x16xf32>
    %109 = arith.truncf %108 : vector<16x16xf32> to vector<16x16xbf16>
    %110 = vector.extract_strided_slice %11 {offsets = [0, 24], sizes = [16, 8], strides = [1, 1]} : vector<16x32xbf16> to vector<16x8xbf16>
    %cst_26 = arith.constant dense<0.000000e+00> : vector<16x8xf32>
    %111 = tpu.matmul %109, %110, %cst_26 {dimension_numbers = #tpu.dot_dimension_numbers<[1], [0], [0], [1], [0, 0, 1, 1], [], []>} : vector<16x16xbf16>, vector<16x8xbf16>, vector<16x8xf32> -> vector<16x8xf32>
    %112 = tpu.concatenate %36, %61, %86, %111 in 1 : vector<16x8xf32>, vector<16x8xf32>, vector<16x8xf32>, vector<16x8xf32> -> vector<16x32xf32>
    %113 = vector.broadcast %1 : vector<1x32xf32> to vector<16x32xf32>
    %114 = arith.addf %112, %113 : vector<16x32xf32>
    %cst_27 = arith.constant 0.000000e+00 : f32
    %115 = vector.broadcast %cst_27 : f32 to vector<16x32xf32>
    %116 = arith.maximumf %114, %115 : vector<16x32xf32>
    %117 = arith.truncf %116 : vector<16x32xf32> to vector<16x32xbf16>
    %c0_28 = arith.constant 0 : index
    %c0_29 = arith.constant 0 : index
    %118 = vector.load %arg2[%c0_28, %c0_29] : memref<32x10xbf16, #tpu.memory_space<vmem>>, vector<32x10xbf16>
    %cst_30 = arith.constant dense<0.000000e+00> : vector<16x10xf32>
    %119 = tpu.matmul %117, %118, %cst_30 {dimension_numbers = #tpu.dot_dimension_numbers<[1], [0], [0], [1], [0, 0, 1, 1], [], []>} : vector<16x32xbf16>, vector<32x10xbf16>, vector<16x10xf32> -> vector<16x10xf32>
    %120 = vector.extract_strided_slice %119 {offsets = [0, 0], sizes = [16, 8], strides = [1, 1]} : vector<16x10xf32> to vector<16x8xf32>
    %121 = vector.extract_strided_slice %119 {offsets = [0, 9], sizes = [16, 1], strides = [1, 1]} : vector<16x10xf32> to vector<16x1xf32>
    %122 = vector.extract_strided_slice %119 {offsets = [0, 8], sizes = [16, 1], strides = [1, 1]} : vector<16x10xf32> to vector<16x1xf32>
    %123 = tpu.transpose %122, [1, 0] : vector<16x1xf32> -> vector<1x16xf32>
    %124 = vector.broadcast %121 : vector<16x1xf32> to vector<16x16xf32>
    %125 = vector.broadcast %123 : vector<1x16xf32> to vector<16x16xf32>
    %126 = arith.addf %124, %125 : vector<16x16xf32>
    %cst_31 = arith.constant 0.000000e+00 : f32
    %127 = vector.broadcast %cst_31 : f32 to vector<16x16xf32>
    %128 = arith.cmpf ogt, %126, %127 : vector<16x16xf32>
    %cst_32 = arith.constant 2.000000e-01 : f32
    %129 = vector.broadcast %cst_32 : f32 to vector<16x16xf32>
    %130 = arith.mulf %129, %126 : vector<16x16xf32>
    %131 = arith.select %128, %126, %130 : vector<16x16xi1>, vector<16x16xf32>
    %132 = arith.addf %131, %4 : vector<16x16xf32>
    %cst_33 = arith.constant dense<0xFF800000> : vector<16xf32>
    %133 = vector.multi_reduction <maximumf>, %132, %cst_33 [1] : vector<16x16xf32> to vector<16xf32>
    %134 = vector.shape_cast %133 : vector<16xf32> to vector<16x1xf32>
    %135 = vector.broadcast %134 : vector<16x1xf32> to vector<16x16xf32>
    %136 = arith.subf %132, %135 : vector<16x16xf32>
    %137 = math.exp %136 : vector<16x16xf32>
    %cst_34 = arith.constant dense<0.000000e+00> : vector<16xf32>
    %138 = vector.multi_reduction <add>, %137, %cst_34 [1] : vector<16x16xf32> to vector<16xf32>
    %139 = vector.shape_cast %138 : vector<16xf32> to vector<16x1xf32>
    %140 = tpu.reciprocal %139 {approx = true} : vector<16x1xf32> -> vector<16x1xf32>
    %141 = vector.broadcast %140 : vector<16x1xf32> to vector<16x16xf32>
    %142 = arith.mulf %137, %141 : vector<16x16xf32>
    %143 = arith.truncf %142 : vector<16x16xf32> to vector<16x16xbf16>
    %144 = arith.truncf %120 : vector<16x8xf32> to vector<16x8xbf16>
    %cst_35 = arith.constant dense<0.000000e+00> : vector<16x8xf32>
    %145 = tpu.matmul %143, %144, %cst_35 {dimension_numbers = #tpu.dot_dimension_numbers<[1], [0], [0], [1], [0, 0, 1, 1], [], []>} : vector<16x16xbf16>, vector<16x8xbf16>, vector<16x8xf32> -> vector<16x8xf32>
    %146 = vector.broadcast %2 : vector<1x8xf32> to vector<16x8xf32>
    %147 = arith.addf %145, %146 : vector<16x8xf32>
    %cst_36 = arith.constant dense<0xFF800000> : vector<16xf32>
    %148 = vector.multi_reduction <maximumf>, %147, %cst_36 [1] : vector<16x8xf32> to vector<16xf32>
    %149 = vector.shape_cast %148 : vector<16xf32> to vector<16x1xf32>
    %150 = vector.broadcast %149 : vector<16x1xf32> to vector<16x8xf32>
    %151 = arith.subf %147, %150 : vector<16x8xf32>
    %152 = math.exp %151 : vector<16x8xf32>
    %cst_37 = arith.constant dense<0.000000e+00> : vector<16xf32>
    %153 = vector.multi_reduction <add>, %152, %cst_37 [1] : vector<16x8xf32> to vector<16xf32>
    %154 = vector.shape_cast %153 : vector<16xf32> to vector<16x1xf32>
    %155 = vector.broadcast %154 : vector<16x1xf32> to vector<16x8xf32>
    %156 = arith.divf %152, %155 : vector<16x8xf32>
    %c0_38 = arith.constant 0 : index
    %c0_39 = arith.constant 0 : index
    %157 = vector.load %arg5[%c0_38, %c0_39] : memref<16x8xf32, #tpu.memory_space<vmem>>, vector<16x8xf32>
    tpu.vector_store %arg5[%c0_38, %c0_39], %156 {strides = array<i32>} : memref<16x8xf32, #tpu.memory_space<vmem>>, vector<16x8xf32>,
    return
  }
}

</mosaic_0001>

<llo_original>
// kernel: tpu_custom_call.1
$region0: #{tpu_custom_call.1}
  #allocation0 [shape = 'u32[]', space=smem, size = 0x4, offset = 0x4, fixed_abs, tag = 'smem constant byte address 0x4 - core index']
  #allocation1 [shape = 'u32[144,128]{1,0:T(1,128)}', space=vmem, size = 0x12000, scoped, tag = 'internal scratch']
  %s0 = inlined_call_operand.vmem [shape: bf16[16,16], index: 0, kind: input, shape index: {}]
  %s1 = inlined_call_operand.vmem [shape: bf16[16,40], index: 1, kind: input, shape index: {}]
  %s2 = inlined_call_operand.vmem [shape: bf16[32,10], index: 2, kind: input, shape index: {}]
  %s3 = inlined_call_operand.vmem [shape: f32[1,40], index: 3, kind: input, shape index: {}]
  %s4 = inlined_call_operand.vmem [shape: bf16[16,16], index: 4, kind: input, shape index: {}]
  %s5 = inlined_call_operand.vmem [shape: f32[16,8], index: 5, kind: output, shape index: {}]
  %s6 = sld [smem:[#allocation0]]
  $region30: #{tpu_custom_call.1} parent=0
    _
  %s8 = ssub.s32 1, %s6
  %s9 = scalar_select 0, %s8, %s6
  // Predicated region
  $region2: #{tpu_custom_call.1} parent=0 // pred_check
    _
  $region3: #{tpu_custom_call.1} parent=0 // pred_check_branch
    %11 = sbr.rel (0) target = $region5
  $region4: #{tpu_custom_call.1} parent=0 // pred_region
    _
  $region5: #{tpu_custom_call.1} parent=0 // pred_fallthru
    _
  // Predicated region
  $region6: #{tpu_custom_call.1} parent=0 // pred_check
    _
  $region7: #{tpu_custom_call.1} parent=0 // pred_check_branch
    %13 = sbr.rel (0) target = $region9
  $region8: #{tpu_custom_call.1} parent=0 // pred_region
    _
  $region9: #{tpu_custom_call.1} parent=0 // pred_fallthru
    _
  // Predicated region
  $region10: #{tpu_custom_call.1} parent=0 // pred_check
    _
  $region11: #{tpu_custom_call.1} parent=0 // pred_check_branch
    %15 = sbr.rel (0) target = $region13
  $region12: #{tpu_custom_call.1} parent=0 // pred_region
    _
  $region13: #{tpu_custom_call.1} parent=0 // pred_fallthru
    _
  // Predicated region
  $region14: #{tpu_custom_call.1} parent=0 // pred_check
    _
  $region15: #{tpu_custom_call.1} parent=0 // pred_check_branch
    %17 = sbr.rel (0) target = $region17
  $region16: #{tpu_custom_call.1} parent=0 // pred_region
    _
  $region17: #{tpu_custom_call.1} parent=0 // pred_fallthru
    _
  // Predicated region
  $region18: #{tpu_custom_call.1} parent=0 // pred_check
    _
  $region19: #{tpu_custom_call.1} parent=0 // pred_check_branch
    %19 = sbr.rel (0) target = $region21
  $region20: #{tpu_custom_call.1} parent=0 // pred_region
    _
  $region21: #{tpu_custom_call.1} parent=0 // pred_fallthru
    _
  %v21 = vld [vmem:[%s3] sm:$0x1]
  %v22 = vld [vmem:[%s4] sm:$0xf]
  %v23 = vld [vmem:[%s4 + $0x4] sm:$0xf]
  %v24 = vunpack.c.l.bf16 %v22
  %v25 = vunpack.c.l.bf16 %v23
  %v26 = vld [vmem:[%s0] sm:$0xf]
  %v27 = vld [vmem:[%s0 + $0x4] sm:$0xf]
  %v28 = vld [vmem:[%s1] sm:$0xf]
  %v29 = vld [vmem:[%s1 + $0x4] sm:$0xf]
  %v32 = vunpack.c.l.b16 %v26
  %v33 = vunpack.c.l.b16 %v27
  %v34 = vpack.c.b16 %v33, %v32
  %v37 = vunpack.c.l.b16 %v28
  %v38 = vunpack.c.l.b16 %v29
  %v39 = vpack.c.b16 %v38, %v37
  %vm41 = vcmask 130048
  %v43 = vsel %vm41, %v34, 0
  %45 = vmatprep.subr.bf16.mxu0 0
  %46 = vmatpush1.bf16.msra.mxu0 %v39
  %47 = vmatprep.subr.bf16.mxu0 0
  %48 = vmatpush1.bf16.msra.mxu0 0
  %49 = vmatprep.subr.bf16.mxu0 0
  %50 = vmatpush1.bf16.msra.mxu0 0
  %51 = vmatprep.subr.bf16.mxu0 0
  %52 = vmatpush1.bf16.msra.mxu0 0
  %53 = vmatprep.subr.bf16.mxu0 0
  %54 = vmatpush1.bf16.msra.mxu0 0
  %55 = vmatprep.subr.bf16.mxu0 0
  %56 = vmatpush1.bf16.msra.mxu0 0
  %57 = vmatprep.subr.bf16.mxu0 0
  %58 = vmatpush1.bf16.msra.mxu0 0
  %59 = vmatprep.subr.bf16.mxu0 0
  %60 = vmatpush1.bf16.msra.mxu0 0
  %61 = vmatprep.subr.bf16.mxu0 0
  %62 = vmatpush1.bf16.msra.mxu0 0
  %63 = vmatprep.subr.bf16.mxu0 0
  %64 = vmatpush1.bf16.msra.mxu0 0
  %65 = vmatprep.subr.bf16.mxu0 0
  %66 = vmatpush1.bf16.msra.mxu0 0
  %67 = vmatprep.subr.bf16.mxu0 0
  %68 = vmatpush1.bf16.msra.mxu0 0
  %69 = vmatprep.subr.bf16.mxu0 0
  %70 = vmatpush1.bf16.msra.mxu0 0
  %71 = vmatprep.subr.bf16.mxu0 0
  %72 = vmatpush1.bf16.msra.mxu0 0
  %73 = vmatprep.subr.bf16.mxu0 0
  %74 = vmatpush1.bf16.msra.mxu0 0
  %75 = vmatprep.subr.bf16.mxu0 0
  %76 = vmatpush1.bf16.msra.mxu0 0
  %77 = vmatprep.mubr.bf16.mxu0 0
  %78 = vmatmul.mubr.bf16.gmra.mrb[0].mxu0 %v43
  %v79 = vpop.f32.mrb[0].mxu0
  %v80 = vadd.f32 0.0, %v79
  %v81 = vpop.f32.mrb[0].mxu0
  %v82 = vpop.f32.mrb[0].mxu0
  %v83 = vadd.f32 0.0, %v82
  %v84 = vpop.f32.mrb[0].mxu0
  %85 = vdwg.mxu0
  %v86 = vpack.c.bf16 %v83, %v80
  %89 = vrot.lane.b32.xlu0 %v80, 96
  %v90 = vpop.permute.xlu0 %89
  %91 = vrot.lane.b32.xlu0 %v83, 96
  %v92 = vpop.permute.xlu0 %91
  %95 = vxpose.xlu0.b32.start [1/16] %v90, 128
  %96 = vxpose.xlu0.b32.cont [2/16] %v92, 128
  %97 = vxpose.xlu0.b32.cont [3/16] 0.0, 128
  %98 = vxpose.xlu0.b32.cont [4/16] 0.0, 128
  %99 = vxpose.xlu0.b32.cont [5/16] 0.0, 128
  %100 = vxpose.xlu0.b32.cont [6/16] 0.0, 128
  %101 = vxpose.xlu0.b32.cont [7/16] 0.0, 128
  %102 = vxpose.xlu0.b32.cont [8/16] 0.0, 128
  %103 = vxpose.xlu0.b32.cont [9/16] 0.0, 128
  %104 = vxpose.xlu0.b32.cont [10/16] 0.0, 128
  %105 = vxpose.xlu0.b32.cont [11/16] 0.0, 128
  %106 = vxpose.xlu0.b32.cont [12/16] 0.0, 128
  %107 = vxpose.xlu0.b32.cont [13/16] 0.0, 128
  %108 = vxpose.xlu0.b32.cont [14/16] 0.0, 128
  %109 = vxpose.xlu0.b32.cont [15/16] 0.0, 128
  %110 = vxpose.xlu0.b32.end [16/16] 0.0, 128
  %v111 = vpop.trf.xlu0
  %v112 = vpop.trf.xlu0
  %v113 = vpop.trf.xlu0
  %v114 = vpop.trf.xlu0
  %v115 = vpop.trf.xlu0
  %v116 = vpop.trf.xlu0
  %v117 = vpop.trf.xlu0
  %v118 = vpop.trf.xlu0
  %v119 = vpop.trf.xlu0
  %v120 = vpop.trf.xlu0
  %v121 = vpop.trf.xlu0
  %v122 = vpop.trf.xlu0
  %v123 = vpop.trf.xlu0
  %v124 = vpop.trf.xlu0
  %v125 = vpop.trf.xlu0
  %v126 = vpop.trf.xlu0
  %127 = vset.pattern.permute.xlu0 36
  %128 = vperm.xlu0 %127, %v80
  %v129 = vpop.permute.xlu0 %128
  %131 = vset.pattern.permute.xlu0 36
  %132 = vperm.xlu0 %131, %v83
  %v133 = vpop.permute.xlu0 %132
  %v135 = vlaneseq
  %v136 = vshrl.u32 %v135, 7
  %v137 = vsub.s32 0, %v136
  %v138 = vrot.slane %v111, %v137
  %v139 = vadd.f32 %v129, %v138
  %v140 = vadd.f32 %v133, %v138
  %vm141 = vcmp.gt.f32.partialorder %v139, 0.0
  %vm142 = vcmp.gt.f32.partialorder %v140, 0.0
  %v143 = vmul.f32 %v139, 0.2
  %v144 = vmul.f32 %v140, 0.2
  %v145 = vsel %vm141, %v139, %v143
  %v146 = vsel %vm142, %v140, %v144
  %v147 = vadd.f32 %v145, %v24
  %v148 = vadd.f32 %v146, %v25
  %v149 = vsel %vm41, %v147, -inf
  %150 = vmax.xlane.f32.xlu0 %v149
  %v151 = vpop.xlane.xlu0 %150
  %v152 = vsel %vm41, %v148, -inf
  %153 = vmax.xlane.f32.xlu0 %v152
  %v154 = vpop.xlane.xlu0 %153
  %v155 = vsub.f32 %v147, %v151
  %v156 = vsub.f32 %v148, %v154
  %v157 = vmul.f32 %v155, 1.442695
  %v158 = vpow.pop %v157
  %v159 = vmul.f32 %v156, 1.442695
  %v160 = vpow.pop %v159
  %v161 = vsel %vm41, %v158, 0.0
  %162 = vadd.xlane.f32.xlu0 %v161
  %v163 = vpop.xlane.xlu0 %162
  %v164 = vsel %vm41, %v160, 0.0
  %165 = vadd.xlane.f32.xlu0 %v164
  %v166 = vpop.xlane.xlu0 %165
  %v167 = vrcp.pop %v163
  %v168 = vrcp.pop %v166
  %v169 = vmul.f32 %v158, %v167
  %v170 = vmul.f32 %v160, %v168
  %v171 = vpack.c.bf16 %v170, %v169
  %v173 = vsel %vm41, %v171, 0
  %175 = vmatprep.subr.bf16.mxu0 0
  %176 = vmatpush1.bf16.msra.mxu0 %v86
  %177 = vmatprep.subr.bf16.mxu0 0
  %178 = vmatpush1.bf16.msra.mxu0 0
  %179 = vmatprep.subr.bf16.mxu0 0
  %180 = vmatpush1.bf16.msra.mxu0 0
  %181 = vmatprep.subr.bf16.mxu0 0
  %182 = vmatpush1.bf16.msra.mxu0 0
  %183 = vmatprep.subr.bf16.mxu0 0
  %184 = vmatpush1.bf16.msra.mxu0 0
  %185 = vmatprep.subr.bf16.mxu0 0
  %186 = vmatpush1.bf16.msra.mxu0 0
  %187 = vmatprep.subr.bf16.mxu0 0
  %188 = vmatpush1.bf16.msra.mxu0 0
  %189 = vmatprep.subr.bf16.mxu0 0
  %190 = vmatpush1.bf16.msra.mxu0 0
  %191 = vmatprep.subr.bf16.mxu0 0
  %192 = vmatpush1.bf16.msra.mxu0 0
  %193 = vmatprep.subr.bf16.mxu0 0
  %194 = vmatpush1.bf16.msra.mxu0 0
  %195 = vmatprep.subr.bf16.mxu0 0
  %196 = vmatpush1.bf16.msra.mxu0 0
  %197 = vmatprep.subr.bf16.mxu0 0
  %198 = vmatpush1.bf16.msra.mxu0 0
  %199 = vmatprep.subr.bf16.mxu0 0
  %200 = vmatpush1.bf16.msra.mxu0 0
  %201 = vmatprep.subr.bf16.mxu0 0
  %202 = vmatpush1.bf16.msra.mxu0 0
  %203 = vmatprep.subr.bf16.mxu0 0
  %204 = vmatpush1.bf16.msra.mxu0 0
  %205 = vmatprep.subr.bf16.mxu0 0
  %206 = vmatpush1.bf16.msra.mxu0 0
  %207 = vmatprep.mubr.bf16.mxu0 0
  %208 = vmatmul.mubr.bf16.gmra.mrb[0].mxu0 %v173
  %v209 = vpop.f32.mrb[0].mxu0
  %v210 = vadd.f32 0.0, %v209
  %v211 = vpop.f32.mrb[0].mxu0
  %v212 = vpop.f32.mrb[0].mxu0
  %v213 = vadd.f32 0.0, %v212
  %v214 = vpop.f32.mrb[0].mxu0
  %215 = vdwg.mxu0
  %216 = vrot.lane.b32.xlu0 %v80, 95
  %v217 = vpop.permute.xlu0 %216
  %218 = vrot.lane.b32.xlu0 %v83, 95
  %v219 = vpop.permute.xlu0 %218
  %222 = vxpose.xlu0.b32.start [1/16] %v217, 128
  %223 = vxpose.xlu0.b32.cont [2/16] %v219, 128
  %224 = vxpose.xlu0.b32.cont [3/16] 0.0, 128
  %225 = vxpose.xlu0.b32.cont [4/16] 0.0, 128
  %226 = vxpose.xlu0.b32.cont [5/16] 0.0, 128
  %227 = vxpose.xlu0.b32.cont [6/16] 0.0, 128
  %228 = vxpose.xlu0.b32.cont [7/16] 0.0, 128
  %229 = vxpose.xlu0.b32.cont [8/16] 0.0, 128
  %230 = vxpose.xlu0.b32.cont [9/16] 0.0, 128
  %231 = vxpose.xlu0.b32.cont [10/16] 0.0, 128
  %232 = vxpose.xlu0.b32.cont [11/16] 0.0, 128
  %233 = vxpose.xlu0.b32.cont [12/16] 0.0, 128
  %234 = vxpose.xlu0.b32.cont [13/16] 0.0, 128
  %235 = vxpose.xlu0.b32.cont [14/16] 0.0, 128
  %236 = vxpose.xlu0.b32.cont [15/16] 0.0, 128
  %237 = vxpose.xlu0.b32.end [16/16] 0.0, 128
  %v238 = vpop.trf.xlu0
  %v239 = vpop.trf.xlu0
  %v240 = vpop.trf.xlu0
  %v241 = vpop.trf.xlu0
  %v242 = vpop.trf.xlu0
  %v243 = vpop.trf.xlu0
  %v244 = vpop.trf.xlu0
  %v245 = vpop.trf.xlu0
  %v246 = vpop.trf.xlu0
  %v247 = vpop.trf.xlu0
  %v248 = vpop.trf.xlu0
  %v249 = vpop.trf.xlu0
  %v250 = vpop.trf.xlu0
  %v251 = vpop.trf.xlu0
  %v252 = vpop.trf.xlu0
  %v253 = vpop.trf.xlu0
  %254 = vset.pattern.permute.xlu0 37
  %255 = vperm.xlu0 %254, %v80
  %v256 = vpop.permute.xlu0 %255
  %258 = vset.pattern.permute.xlu0 37
  %259 = vperm.xlu0 %258, %v83
  %v260 = vpop.permute.xlu0 %259
  %v262 = vlaneseq
  %v263 = vshrl.u32 %v262, 7
  %v264 = vsub.s32 0, %v263
  %v265 = vrot.slane %v238, %v264
  %v266 = vadd.f32 %v256, %v265
  %v267 = vadd.f32 %v260, %v265
  %vm268 = vcmp.gt.f32.partialorder %v266, 0.0
  %vm269 = vcmp.gt.f32.partialorder %v267, 0.0
  %v270 = vmul.f32 %v266, 0.2
  %v271 = vmul.f32 %v267, 0.2
  %v272 = vsel %vm268, %v266, %v270
  %v273 = vsel %vm269, %v267, %v271
  %v274 = vadd.f32 %v272, %v24
  %v275 = vadd.f32 %v273, %v25
  %v276 = vsel %vm41, %v274, -inf
  %277 = vmax.xlane.f32.xlu0 %v276
  %v278 = vpop.xlane.xlu0 %277
  %v279 = vsel %vm41, %v275, -inf
  %280 = vmax.xlane.f32.xlu0 %v279
  %v281 = vpop.xlane.xlu0 %280
  %v282 = vsub.f32 %v274, %v278
  %v283 = vsub.f32 %v275, %v281
  %v284 = vmul.f32 %v282, 1.442695
  %v285 = vpow.pop %v284
  %v286 = vmul.f32 %v283, 1.442695
  %v287 = vpow.pop %v286
  %v288 = vsel %vm41, %v285, 0.0
  %289 = vadd.xlane.f32.xlu0 %v288
  %v290 = vpop.xlane.xlu0 %289
  %v291 = vsel %vm41, %v287, 0.0
  %292 = vadd.xlane.f32.xlu0 %v291
  %v293 = vpop.xlane.xlu0 %292
  %v294 = vrcp.pop %v290
  %v295 = vrcp.pop %v293
  %v296 = vmul.f32 %v285, %v294
  %v297 = vmul.f32 %v287, %v295
  %v298 = vpack.c.bf16 %v297, %v296
  %300 = vrot.lane.b32.xlu0 %v86, 120
  %v301 = vpop.permute.xlu0 %300
  %v304 = vsel %vm41, %v298, 0
  %306 = vmatprep.subr.bf16.mxu0 0
  %307 = vmatpush1.bf16.msra.mxu0 %v301
  %308 = vmatprep.subr.bf16.mxu0 0
  %309 = vmatpush1.bf16.msra.mxu0 0
  %310 = vmatprep.subr.bf16.mxu0 0
  %311 = vmatpush1.bf16.msra.mxu0 0
  %312 = vmatprep.subr.bf16.mxu0 0
  %313 = vmatpush1.bf16.msra.mxu0 0
  %314 = vmatprep.subr.bf16.mxu0 0
  %315 = vmatpush1.bf16.msra.mxu0 0
  %316 = vmatprep.subr.bf16.mxu0 0
  %317 = vmatpush1.bf16.msra.mxu0 0
  %318 = vmatprep.subr.bf16.mxu0 0
  %319 = vmatpush1.bf16.msra.mxu0 0
  %320 = vmatprep.subr.bf16.mxu0 0
  %321 = vmatpush1.bf16.msra.mxu0 0
  %322 = vmatprep.subr.bf16.mxu0 0
  %323 = vmatpush1.bf16.msra.mxu0 0
  %324 = vmatprep.subr.bf16.mxu0 0
  %325 = vmatpush1.bf16.msra.mxu0 0
  %326 = vmatprep.subr.bf16.mxu0 0
  %327 = vmatpush1.bf16.msra.mxu0 0
  %328 = vmatprep.subr.bf16.mxu0 0
  %329 = vmatpush1.bf16.msra.mxu0 0
  %330 = vmatprep.subr.bf16.mxu0 0
  %331 = vmatpush1.bf16.msra.mxu0 0
  %332 = vmatprep.subr.bf16.mxu0 0
  %333 = vmatpush1.bf16.msra.mxu0 0
  %334 = vmatprep.subr.bf16.mxu0 0
  %335 = vmatpush1.bf16.msra.mxu0 0
  %336 = vmatprep.subr.bf16.mxu0 0
  %337 = vmatpush1.bf16.msra.mxu0 0
  %338 = vmatprep.mubr.bf16.mxu0 0
  %339 = vmatmul.mubr.bf16.gmra.mrb[0].mxu0 %v304
  %v340 = vpop.f32.mrb[0].mxu0
  %v341 = vadd.f32 0.0, %v340
  %v342 = vpop.f32.mrb[0].mxu0
  %v343 = vpop.f32.mrb[0].mxu0
  %v344 = vadd.f32 0.0, %v343
  %v345 = vpop.f32.mrb[0].mxu0
  %346 = vdwg.mxu0
  %347 = vrot.lane.b32.xlu0 %v80, 94
  %v348 = vpop.permute.xlu0 %347
  %349 = vrot.lane.b32.xlu0 %v83, 94
  %v350 = vpop.permute.xlu0 %349
  %353 = vxpose.xlu0.b32.start [1/16] %v348, 128
  %354 = vxpose.xlu0.b32.cont [2/16] %v350, 128
  %355 = vxpose.xlu0.b32.cont [3/16] 0.0, 128
  %356 = vxpose.xlu0.b32.cont [4/16] 0.0, 128
  %357 = vxpose.xlu0.b32.cont [5/16] 0.0, 128
  %358 = vxpose.xlu0.b32.cont [6/16] 0.0, 128
  %359 = vxpose.xlu0.b32.cont [7/16] 0.0, 128
  %360 = vxpose.xlu0.b32.cont [8/16] 0.0, 128
  %361 = vxpose.xlu0.b32.cont [9/16] 0.0, 128
  %362 = vxpose.xlu0.b32.cont [10/16] 0.0, 128
  %363 = vxpose.xlu0.b32.cont [11/16] 0.0, 128
  %364 = vxpose.xlu0.b32.cont [12/16] 0.0, 128
  %365 = vxpose.xlu0.b32.cont [13/16] 0.0, 128
  %366 = vxpose.xlu0.b32.cont [14/16] 0.0, 128
  %367 = vxpose.xlu0.b32.cont [15/16] 0.0, 128
  %368 = vxpose.xlu0.b32.end [16/16] 0.0, 128
  %v369 = vpop.trf.xlu0
  %v370 = vpop.trf.xlu0
  %v371 = vpop.trf.xlu0
  %v372 = vpop.trf.xlu0
  %v373 = vpop.trf.xlu0
  %v374 = vpop.trf.xlu0
  %v375 = vpop.trf.xlu0
  %v376 = vpop.trf.xlu0
  %v377 = vpop.trf.xlu0
  %v378 = vpop.trf.xlu0
  %v379 = vpop.trf.xlu0
  %v380 = vpop.trf.xlu0
  %v381 = vpop.trf.xlu0
  %v382 = vpop.trf.xlu0
  %v383 = vpop.trf.xlu0
  %v384 = vpop.trf.xlu0
  %385 = vset.pattern.permute.xlu0 38
  %386 = vperm.xlu0 %385, %v80
  %v387 = vpop.permute.xlu0 %386
  %389 = vset.pattern.permute.xlu0 38
  %390 = vperm.xlu0 %389, %v83
  %v391 = vpop.permute.xlu0 %390
  %v393 = vlaneseq
  %v394 = vshrl.u32 %v393, 7
  %v395 = vsub.s32 0, %v394
  %v396 = vrot.slane %v369, %v395
  %v397 = vadd.f32 %v387, %v396
  %v398 = vadd.f32 %v391, %v396
  %vm399 = vcmp.gt.f32.partialorder %v397, 0.0
  %vm400 = vcmp.gt.f32.partialorder %v398, 0.0
  %v401 = vmul.f32 %v397, 0.2
  %v402 = vmul.f32 %v398, 0.2
  %v403 = vsel %vm399, %v397, %v401
  %v404 = vsel %vm400, %v398, %v402
  %v405 = vadd.f32 %v403, %v24
  %v406 = vadd.f32 %v404, %v25
  %v407 = vsel %vm41, %v405, -inf
  %408 = vmax.xlane.f32.xlu0 %v407
  %v409 = vpop.xlane.xlu0 %408
  %v410 = vsel %vm41, %v406, -inf
  %411 = vmax.xlane.f32.xlu0 %v410
  %v412 = vpop.xlane.xlu0 %411
  %v413 = vsub.f32 %v405, %v409
  %v414 = vsub.f32 %v406, %v412
  %v415 = vmul.f32 %v413, 1.442695
  %v416 = vpow.pop %v415
  %v417 = vmul.f32 %v414, 1.442695
  %v418 = vpow.pop %v417
  %v419 = vsel %vm41, %v416, 0.0
  %420 = vadd.xlane.f32.xlu0 %v419
  %v421 = vpop.xlane.xlu0 %420
  %v422 = vsel %vm41, %v418, 0.0
  %423 = vadd.xlane.f32.xlu0 %v422
  %v424 = vpop.xlane.xlu0 %423
  %v425 = vrcp.pop %v421
  %v426 = vrcp.pop %v424
  %v427 = vmul.f32 %v416, %v425
  %v428 = vmul.f32 %v418, %v426
  %v429 = vpack.c.bf16 %v428, %v427
  %430 = vrot.lane.b32.xlu0 %v86, 112
  %v431 = vpop.permute.xlu0 %430
  %v434 = vsel %vm41, %v429, 0
  %436 = vmatprep.subr.bf16.mxu0 0
  %437 = vmatpush1.bf16.msra.mxu0 %v431
  %438 = vmatprep.subr.bf16.mxu0 0
  %439 = vmatpush1.bf16.msra.mxu0 0
  %440 = vmatprep.subr.bf16.mxu0 0
  %441 = vmatpush1.bf16.msra.mxu0 0
  %442 = vmatprep.subr.bf16.mxu0 0
  %443 = vmatpush1.bf16.msra.mxu0 0
  %444 = vmatprep.subr.bf16.mxu0 0
  %445 = vmatpush1.bf16.msra.mxu0 0
  %446 = vmatprep.subr.bf16.mxu0 0
  %447 = vmatpush1.bf16.msra.mxu0 0
  %448 = vmatprep.subr.bf16.mxu0 0
  %449 = vmatpush1.bf16.msra.mxu0 0
  %450 = vmatprep.subr.bf16.mxu0 0
  %451 = vmatpush1.bf16.msra.mxu0 0
  %452 = vmatprep.subr.bf16.mxu0 0
  %453 = vmatpush1.bf16.msra.mxu0 0
  %454 = vmatprep.subr.bf16.mxu0 0
  %455 = vmatpush1.bf16.msra.mxu0 0
  %456 = vmatprep.subr.bf16.mxu0 0
  %457 = vmatpush1.bf16.msra.mxu0 0
  %458 = vmatprep.subr.bf16.mxu0 0
  %459 = vmatpush1.bf16.msra.mxu0 0
  %460 = vmatprep.subr.bf16.mxu0 0
  %461 = vmatpush1.bf16.msra.mxu0 0
  %462 = vmatprep.subr.bf16.mxu0 0
  %463 = vmatpush1.bf16.msra.mxu0 0
  %464 = vmatprep.subr.bf16.mxu0 0
  %465 = vmatpush1.bf16.msra.mxu0 0
  %466 = vmatprep.subr.bf16.mxu0 0
  %467 = vmatpush1.bf16.msra.mxu0 0
  %468 = vmatprep.mubr.bf16.mxu0 0
  %469 = vmatmul.mubr.bf16.gmra.mrb[0].mxu0 %v434
  %v470 = vpop.f32.mrb[0].mxu0
  %v471 = vadd.f32 0.0, %v470
  %v472 = vpop.f32.mrb[0].mxu0
  %v473 = vpop.f32.mrb[0].mxu0
  %v474 = vadd.f32 0.0, %v473
  %v475 = vpop.f32.mrb[0].mxu0
  %476 = vdwg.mxu0
  %477 = vrot.lane.b32.xlu0 %v80, 93
  %v478 = vpop.permute.xlu0 %477
  %479 = vrot.lane.b32.xlu0 %v83, 93
  %v480 = vpop.permute.xlu0 %479
  %483 = vxpose.xlu0.b32.start [1/16] %v478, 128
  %484 = vxpose.xlu0.b32.cont [2/16] %v480, 128
  %485 = vxpose.xlu0.b32.cont [3/16] 0.0, 128
  %486 = vxpose.xlu0.b32.cont [4/16] 0.0, 128
  %487 = vxpose.xlu0.b32.cont [5/16] 0.0, 128
  %488 = vxpose.xlu0.b32.cont [6/16] 0.0, 128
  %489 = vxpose.xlu0.b32.cont [7/16] 0.0, 128
  %490 = vxpose.xlu0.b32.cont [8/16] 0.0, 128
  %491 = vxpose.xlu0.b32.cont [9/16] 0.0, 128
  %492 = vxpose.xlu0.b32.cont [10/16] 0.0, 128
  %493 = vxpose.xlu0.b32.cont [11/16] 0.0, 128
  %494 = vxpose.xlu0.b32.cont [12/16] 0.0, 128
  %495 = vxpose.xlu0.b32.cont [13/16] 0.0, 128
  %496 = vxpose.xlu0.b32.cont [14/16] 0.0, 128
  %497 = vxpose.xlu0.b32.cont [15/16] 0.0, 128
  %498 = vxpose.xlu0.b32.end [16/16] 0.0, 128
  %v499 = vpop.trf.xlu0
  %v500 = vpop.trf.xlu0
  %v501 = vpop.trf.xlu0
  %v502 = vpop.trf.xlu0
  %v503 = vpop.trf.xlu0
  %v504 = vpop.trf.xlu0
  %v505 = vpop.trf.xlu0
  %v506 = vpop.trf.xlu0
  %v507 = vpop.trf.xlu0
  %v508 = vpop.trf.xlu0
  %v509 = vpop.trf.xlu0
  %v510 = vpop.trf.xlu0
  %v511 = vpop.trf.xlu0
  %v512 = vpop.trf.xlu0
  %v513 = vpop.trf.xlu0
  %v514 = vpop.trf.xlu0
  %515 = vset.pattern.permute.xlu0 39
  %516 = vperm.xlu0 %515, %v80
  %v517 = vpop.permute.xlu0 %516
  %519 = vset.pattern.permute.xlu0 39
  %520 = vperm.xlu0 %519, %v83
  %v521 = vpop.permute.xlu0 %520
  %v523 = vlaneseq
  %v524 = vshrl.u32 %v523, 7
  %v525 = vsub.s32 0, %v524
  %v526 = vrot.slane %v499, %v525
  %v527 = vadd.f32 %v517, %v526
  %v528 = vadd.f32 %v521, %v526
  %vm529 = vcmp.gt.f32.partialorder %v527, 0.0
  %vm530 = vcmp.gt.f32.partialorder %v528, 0.0
  %v531 = vmul.f32 %v527, 0.2
  %v532 = vmul.f32 %v528, 0.2
  %v533 = vsel %vm529, %v527, %v531
  %v534 = vsel %vm530, %v528, %v532
  %v535 = vadd.f32 %v533, %v24
  %v536 = vadd.f32 %v534, %v25
  %v537 = vsel %vm41, %v535, -inf
  %538 = vmax.xlane.f32.xlu0 %v537
  %v539 = vpop.xlane.xlu0 %538
  %v540 = vsel %vm41, %v536, -inf
  %541 = vmax.xlane.f32.xlu0 %v540
  %v542 = vpop.xlane.xlu0 %541
  %v543 = vsub.f32 %v535, %v539
  %v544 = vsub.f32 %v536, %v542
  %v545 = vmul.f32 %v543, 1.442695
  %v546 = vpow.pop %v545
  %v547 = vmul.f32 %v544, 1.442695
  %v548 = vpow.pop %v547
  %v549 = vsel %vm41, %v546, 0.0
  %550 = vadd.xlane.f32.xlu0 %v549
  %v551 = vpop.xlane.xlu0 %550
  %v552 = vsel %vm41, %v548, 0.0
  %553 = vadd.xlane.f32.xlu0 %v552
  %v554 = vpop.xlane.xlu0 %553
  %v555 = vrcp.pop %v551
  %v556 = vrcp.pop %v554
  %v557 = vmul.f32 %v546, %v555
  %v558 = vmul.f32 %v548, %v556
  %v559 = vpack.c.bf16 %v558, %v557
  %560 = vrot.lane.b32.xlu0 %v86, 104
  %v561 = vpop.permute.xlu0 %560
  %v564 = vsel %vm41, %v559, 0
  %566 = vmatprep.subr.bf16.mxu0 0
  %567 = vmatpush1.bf16.msra.mxu0 %v561
  %568 = vmatprep.subr.bf16.mxu0 0
  %569 = vmatpush1.bf16.msra.mxu0 0
  %570 = vmatprep.subr.bf16.mxu0 0
  %571 = vmatpush1.bf16.msra.mxu0 0
  %572 = vmatprep.subr.bf16.mxu0 0
  %573 = vmatpush1.bf16.msra.mxu0 0
  %574 = vmatprep.subr.bf16.mxu0 0
  %575 = vmatpush1.bf16.msra.mxu0 0
  %576 = vmatprep.subr.bf16.mxu0 0
  %577 = vmatpush1.bf16.msra.mxu0 0
  %578 = vmatprep.subr.bf16.mxu0 0
  %579 = vmatpush1.bf16.msra.mxu0 0
  %580 = vmatprep.subr.bf16.mxu0 0
  %581 = vmatpush1.bf16.msra.mxu0 0
  %582 = vmatprep.subr.bf16.mxu0 0
  %583 = vmatpush1.bf16.msra.mxu0 0
  %584 = vmatprep.subr.bf16.mxu0 0
  %585 = vmatpush1.bf16.msra.mxu0 0
  %586 = vmatprep.subr.bf16.mxu0 0
  %587 = vmatpush1.bf16.msra.mxu0 0
  %588 = vmatprep.subr.bf16.mxu0 0
  %589 = vmatpush1.bf16.msra.mxu0 0
  %590 = vmatprep.subr.bf16.mxu0 0
  %591 = vmatpush1.bf16.msra.mxu0 0
  %592 = vmatprep.subr.bf16.mxu0 0
  %593 = vmatpush1.bf16.msra.mxu0 0
  %594 = vmatprep.subr.bf16.mxu0 0
  %595 = vmatpush1.bf16.msra.mxu0 0
  %596 = vmatprep.subr.bf16.mxu0 0
  %597 = vmatpush1.bf16.msra.mxu0 0
  %598 = vmatprep.mubr.bf16.mxu0 0
  %599 = vmatmul.mubr.bf16.gmra.mrb[0].mxu0 %v564
  %v600 = vpop.f32.mrb[0].mxu0
  %v601 = vadd.f32 0.0, %v600
  %v602 = vpop.f32.mrb[0].mxu0
  %v603 = vpop.f32.mrb[0].mxu0
  %v604 = vadd.f32 0.0, %v603
  %v605 = vpop.f32.mrb[0].mxu0
  %606 = vdwg.mxu0
  %609 = vrot.lane.b32.xlu0 %v341, 8
  %v610 = vpop.permute.xlu0 %609
  %611 = vrot.lane.b32.xlu0 %v344, 8
  %v612 = vpop.permute.xlu0 %611
  %617 = vrot.lane.b32.xlu0 %v471, 16
  %v618 = vpop.permute.xlu0 %617
  %619 = vrot.lane.b32.xlu0 %v474, 16
  %v620 = vpop.permute.xlu0 %619
  %625 = vrot.lane.b32.xlu0 %v601, 24
  %v626 = vpop.permute.xlu0 %625
  %627 = vrot.lane.b32.xlu0 %v604, 24
  %v628 = vpop.permute.xlu0 %627
  %vm631 = vcmask 64512
  %v632 = vsel %vm631, %v210, %v610
  %v633 = vsel %vm631, %v213, %v612
  %v634 = vsel %vm41, %v632, %v618
  %v635 = vsel %vm41, %v633, %v620
  %vm636 = vcmask 195584
  %v637 = vsel %vm636, %v634, %v626
  %v638 = vsel %vm636, %v635, %v628
  %v640 = vlaneseq
  %v641 = vshrl.u32 %v640, 7
  %v642 = vsub.s32 0, %v641
  %v643 = vrot.slane %v21, %v642
  %v645 = vadd.f32 %v637, %v643
  %v646 = vadd.f32 %v638, %v643
  %v647 = vmax.f32 %v645, 0.0
  %v648 = vmax.f32 %v646, 0.0
  %v649 = vpack.c.bf16 %v648, %v647
  %v650 = vld [vmem:[%s2] sm:$0xf]
  %v651 = vld [vmem:[%s2 + $0x4] sm:$0xf]
  %v652 = vld [vmem:[%s2 + $0x8] sm:$0xf]
  %v653 = vld [vmem:[%s2 + $0xc] sm:$0xf]
  %v658 = vunpack.c.l.b16 %v650
  %v659 = vunpack.c.l.b16 %v651
  %v660 = vunpack.c.l.b16 %v652
  %v661 = vunpack.c.l.b16 %v653
  %v662 = vpack.c.b16 %v659, %v658
  %v663 = vpack.c.b16 %v661, %v660
  %vm666 = vcmask 261120
  %v668 = vsel %vm666, %v649, 0
  %670 = vmatprep.subr.bf16.mxu0 0
  %671 = vmatpush1.bf16.msra.mxu0 %v662
  %672 = vmatprep.subr.bf16.mxu0 0
  %673 = vmatpush1.bf16.msra.mxu0 %v663
  %674 = vmatprep.subr.bf16.mxu0 0
  %675 = vmatpush1.bf16.msra.mxu0 0
  %676 = vmatprep.subr.bf16.mxu0 0
  %677 = vmatpush1.bf16.msra.mxu0 0
  %678 = vmatprep.subr.bf16.mxu0 0
  %679 = vmatpush1.bf16.msra.mxu0 0
  %680 = vmatprep.subr.bf16.mxu0 0
  %681 = vmatpush1.bf16.msra.mxu0 0
  %682 = vmatprep.subr.bf16.mxu0 0
  %683 = vmatpush1.bf16.msra.mxu0 0
  %684 = vmatprep.subr.bf16.mxu0 0
  %685 = vmatpush1.bf16.msra.mxu0 0
  %686 = vmatprep.subr.bf16.mxu0 0
  %687 = vmatpush1.bf16.msra.mxu0 0
  %688 = vmatprep.subr.bf16.mxu0 0
  %689 = vmatpush1.bf16.msra.mxu0 0
  %690 = vmatprep.subr.bf16.mxu0 0
  %691 = vmatpush1.bf16.msra.mxu0 0
  %692 = vmatprep.subr.bf16.mxu0 0
  %693 = vmatpush1.bf16.msra.mxu0 0
  %694 = vmatprep.subr.bf16.mxu0 0
  %695 = vmatpush1.bf16.msra.mxu0 0
  %696 = vmatprep.subr.bf16.mxu0 0
  %697 = vmatpush1.bf16.msra.mxu0 0
  %698 = vmatprep.subr.bf16.mxu0 0
  %699 = vmatpush1.bf16.msra.mxu0 0
  %700 = vmatprep.subr.bf16.mxu0 0
  %701 = vmatpush1.bf16.msra.mxu0 0
  %702 = vmatprep.mubr.bf16.mxu0 0
  %703 = vmatmul.mubr.bf16.gmra.mrb[0].mxu0 %v668
  %v704 = vpop.f32.mrb[0].mxu0
  %v705 = vadd.f32 0.0, %v704
  %v706 = vpop.f32.mrb[0].mxu0
  %v707 = vpop.f32.mrb[0].mxu0
  %v708 = vadd.f32 0.0, %v707
  %v709 = vpop.f32.mrb[0].mxu0
  %710 = vdwg.mxu0
  %713 = vrot.lane.b32.xlu0 %v705, 120
  %v714 = vpop.permute.xlu0 %713
  %715 = vrot.lane.b32.xlu0 %v708, 120
  %v716 = vpop.permute.xlu0 %715
  %719 = vxpose.xlu0.b32.start [1/16] %v714, 128
  %720 = vxpose.xlu0.b32.cont [2/16] %v716, 128
  %721 = vxpose.xlu0.b32.cont [3/16] 0.0, 128
  %722 = vxpose.xlu0.b32.cont [4/16] 0.0, 128
  %723 = vxpose.xlu0.b32.cont [5/16] 0.0, 128
  %724 = vxpose.xlu0.b32.cont [6/16] 0.0, 128
  %725 = vxpose.xlu0.b32.cont [7/16] 0.0, 128
  %726 = vxpose.xlu0.b32.cont [8/16] 0.0, 128
  %727 = vxpose.xlu0.b32.cont [9/16] 0.0, 128
  %728 = vxpose.xlu0.b32.cont [10/16] 0.0, 128
  %729 = vxpose.xlu0.b32.cont [11/16] 0.0, 128
  %730 = vxpose.xlu0.b32.cont [12/16] 0.0, 128
  %731 = vxpose.xlu0.b32.cont [13/16] 0.0, 128
  %732 = vxpose.xlu0.b32.cont [14/16] 0.0, 128
  %733 = vxpose.xlu0.b32.cont [15/16] 0.0, 128
  %734 = vxpose.xlu0.b32.end [16/16] 0.0, 128
  %v735 = vpop.trf.xlu0
  %v736 = vpop.trf.xlu0
  %v737 = vpop.trf.xlu0
  %v738 = vpop.trf.xlu0
  %v739 = vpop.trf.xlu0
  %v740 = vpop.trf.xlu0
  %v741 = vpop.trf.xlu0
  %v742 = vpop.trf.xlu0
  %v743 = vpop.trf.xlu0
  %v744 = vpop.trf.xlu0
  %v745 = vpop.trf.xlu0
  %v746 = vpop.trf.xlu0
  %v747 = vpop.trf.xlu0
  %v748 = vpop.trf.xlu0
  %v749 = vpop.trf.xlu0
  %v750 = vpop.trf.xlu0
  %751 = vset.pattern.permute.xlu0 9
  %752 = vperm.xlu0 %751, %v705
  %v753 = vpop.permute.xlu0 %752
  %755 = vset.pattern.permute.xlu0 9
  %756 = vperm.xlu0 %755, %v708
  %v757 = vpop.permute.xlu0 %756
  %v759 = vlaneseq
  %v760 = vshrl.u32 %v759, 7
  %v761 = vsub.s32 0, %v760
  %v762 = vrot.slane %v735, %v761
  %v763 = vadd.f32 %v753, %v762
  %v764 = vadd.f32 %v757, %v762
  %vm765 = vcmp.gt.f32.partialorder %v763, 0.0
  %vm766 = vcmp.gt.f32.partialorder %v764, 0.0
  %v767 = vmul.f32 %v763, 0.2
  %v768 = vmul.f32 %v764, 0.2
  %v769 = vsel %vm765, %v763, %v767
  %v770 = vsel %vm766, %v764, %v768
  %v771 = vadd.f32 %v769, %v24
  %v772 = vadd.f32 %v770, %v25
  %v773 = vsel %vm41, %v771, -inf
  %774 = vmax.xlane.f32.xlu0 %v773
  %v775 = vpop.xlane.xlu0 %774
  %v776 = vsel %vm41, %v772, -inf
  %777 = vmax.xlane.f32.xlu0 %v776
  %v778 = vpop.xlane.xlu0 %777
  %v779 = vsub.f32 %v771, %v775
  %v780 = vsub.f32 %v772, %v778
  %v781 = vmul.f32 %v779, 1.442695
  %v782 = vpow.pop %v781
  %v783 = vmul.f32 %v780, 1.442695
  %v784 = vpow.pop %v783
  %v785 = vsel %vm41, %v782, 0.0
  %786 = vadd.xlane.f32.xlu0 %v785
  %v787 = vpop.xlane.xlu0 %786
  %v788 = vsel %vm41, %v784, 0.0
  %789 = vadd.xlane.f32.xlu0 %v788
  %v790 = vpop.xlane.xlu0 %789
  %v791 = vrcp.pop %v787
  %v792 = vrcp.pop %v790
  %v793 = vmul.f32 %v782, %v791
  %v794 = vmul.f32 %v784, %v792
  %v795 = vpack.c.bf16 %v794, %v793
  %v796 = vpack.c.bf16 %v708, %v705
  %797 = vrot.lane.b32.xlu0 %v643, 96
  %v798 = vpop.permute.xlu0 %797
  %v801 = vsel %vm41, %v795, 0
  %803 = vmatprep.subr.bf16.mxu0 0
  %804 = vmatpush1.bf16.msra.mxu0 %v796
  %805 = vmatprep.subr.bf16.mxu0 0
  %806 = vmatpush1.bf16.msra.mxu0 0
  %807 = vmatprep.subr.bf16.mxu0 0
  %808 = vmatpush1.bf16.msra.mxu0 0
  %809 = vmatprep.subr.bf16.mxu0 0
  %810 = vmatpush1.bf16.msra.mxu0 0
  %811 = vmatprep.subr.bf16.mxu0 0
  %812 = vmatpush1.bf16.msra.mxu0 0
  %813 = vmatprep.subr.bf16.mxu0 0
  %814 = vmatpush1.bf16.msra.mxu0 0
  %815 = vmatprep.subr.bf16.mxu0 0
  %816 = vmatpush1.bf16.msra.mxu0 0
  %817 = vmatprep.subr.bf16.mxu0 0
  %818 = vmatpush1.bf16.msra.mxu0 0
  %819 = vmatprep.subr.bf16.mxu0 0
  %820 = vmatpush1.bf16.msra.mxu0 0
  %821 = vmatprep.subr.bf16.mxu0 0
  %822 = vmatpush1.bf16.msra.mxu0 0
  %823 = vmatprep.subr.bf16.mxu0 0
  %824 = vmatpush1.bf16.msra.mxu0 0
  %825 = vmatprep.subr.bf16.mxu0 0
  %826 = vmatpush1.bf16.msra.mxu0 0
  %827 = vmatprep.subr.bf16.mxu0 0
  %828 = vmatpush1.bf16.msra.mxu0 0
  %829 = vmatprep.subr.bf16.mxu0 0
  %830 = vmatpush1.bf16.msra.mxu0 0
  %831 = vmatprep.subr.bf16.mxu0 0
  %832 = vmatpush1.bf16.msra.mxu0 0
  %833 = vmatprep.subr.bf16.mxu0 0
  %834 = vmatpush1.bf16.msra.mxu0 0
  %835 = vmatprep.mubr.bf16.mxu0 0
  %836 = vmatmul.mubr.bf16.gmra.mrb[0].mxu0 %v801
  %v837 = vpop.f32.mrb[0].mxu0
  %v838 = vadd.f32 %v798, %v837
  %v839 = vpop.f32.mrb[0].mxu0
  %v840 = vpop.f32.mrb[0].mxu0
  %v841 = vadd.f32 %v798, %v840
  %v842 = vpop.f32.mrb[0].mxu0
  %843 = vdwg.mxu0
  %v844 = vsel %vm631, %v838, -inf
  %845 = vmax.xlane.f32.xlu0 %v844
  %v846 = vpop.xlane.xlu0 %845
  %v847 = vsel %vm631, %v841, -inf
  %848 = vmax.xlane.f32.xlu0 %v847
  %v849 = vpop.xlane.xlu0 %848
  %v850 = vsub.f32 %v838, %v846
  %v851 = vsub.f32 %v841, %v849
  %v852 = vmul.f32 %v850, 1.442695
  %v853 = vpow.pop %v852
  %v854 = vmul.f32 %v851, 1.442695
  %v855 = vpow.pop %v854
  %v856 = vsel %vm631, %v853, 0.0
  %857 = vadd.xlane.f32.xlu0 %v856
  %v858 = vpop.xlane.xlu0 %857
  %v859 = vsel %vm631, %v855, 0.0
  %860 = vadd.xlane.f32.xlu0 %v859
  %v861 = vpop.xlane.xlu0 %860
  %v862 = vrcp.pop %v858
  %v863 = vmul.f32 %v853, %v862
  %v864 = vrcp.pop %v861
  %v865 = vmul.f32 %v855, %v864
  %866 = vst.msk [vmem:[%s5] sm:$0xff] %vm631, %v863
  %867 = vst.msk [vmem:[%s5 + $0x8] sm:$0xff] %vm631, %v865
  // Predicated region
  $region22: #{tpu_custom_call.1} parent=0 // pred_check
    _
  $region23: #{tpu_custom_call.1} parent=0 // pred_check_branch
    %869 = sbr.rel (0) target = $region25
  $region24: #{tpu_custom_call.1} parent=0 // pred_region
    _
  $region25: #{tpu_custom_call.1} parent=0 // pred_fallthru
    _
  // Predicated region
  $region26: #{tpu_custom_call.1} parent=0 // pred_check
    _
  $region27: #{tpu_custom_call.1} parent=0 // pred_check_branch
    %871 = sbr.rel (0) target = $region29
  $region28: #{tpu_custom_call.1} parent=0 // pred_region
    _
  $region29: #{tpu_custom_call.1} parent=0 // pred_fallthru
    _

</llo_original>
